<compile_context>
chip_gen: v5e
topology: v5e:2x2
jax: 0.10.0
libtpu: 0.0.40
codegen_flags: <defaults>
</compile_context>

<pallas_src>
import math

import jax
import jax.numpy as jnp
from jax.experimental import pallas as pl
from jax.experimental.pallas import tpu as pltpu


def _round_up(x: int, m: int) -> int:
    return ((x + m - 1) // m) * m


def make_fixed_embedding_table(c_in: int, d_model: int) -> jnp.ndarray:
    """Sinusoidal table identical to FixedEmbedding.__init__ (d_model even)."""
    assert d_model % 2 == 0, "d_model must be even (same limit as the PyTorch module)"
    position = jnp.arange(0, c_in, dtype=jnp.float32)[:, None]          # (c_in, 1)
    div_term = jnp.exp(jnp.arange(0, d_model, 2, dtype=jnp.float32)
                       * -(math.log(10000.0) / d_model))                # (d_model//2,)
    w = jnp.zeros((c_in, d_model), jnp.float32)
    w = w.at[:, 0::2].set(jnp.sin(position * div_term))
    w = w.at[:, 1::2].set(jnp.cos(position * div_term))
    return w


def _data_embedding_kernel(xc_ref, mk_ref, wc_ref, tb_ref, out_ref):
    # xc_ref : (tn, Kc)  in_dtype  neighbor-concatenated values (circular conv taps)
    # mk_ref : (tn, F)   i32       temporal index fields
    # wc_ref : (Kc, D)   in_dtype  fused conv weight (taps stacked along rows)
    # tb_ref : (T,  D)   in_dtype  shared sinusoidal table (T = 32 rows)
    # out_ref: (tn, D)   out_dtype
    tn = xc_ref.shape[0]
    n_fields = mk_ref.shape[1]
    n_rows = tb_ref.shape[0]

    # Value embedding: circular conv1d == one MXU matmul over fused taps (f32 acc).
    acc = jnp.dot(xc_ref[...], wc_ref[...], preferred_element_type=jnp.float32)

    # Temporal embedding: multi-hot counts (VPU compares) @ table (small MXU
    # matmul) -- replaces F separate gathers and fuses the embedding sum.
    # NOTE: fields are assumed in-range (< 32), same contract as nn.Embedding.
    iota = jax.lax.broadcasted_iota(jnp.int32, (tn, n_rows), 1)
    mk = mk_ref[...]
    counts = (mk[:, 0:1] == iota).astype(tb_ref.dtype)
    for f in range(1, n_fields):        # static unroll; F is 4 (or 5 for freq='t')
        counts = counts + (mk[:, f:f + 1] == iota).astype(tb_ref.dtype)
    acc = acc + jnp.dot(counts, tb_ref[...], preferred_element_type=jnp.float32)

    # TODO(synk): nn.Dropout(p=0.1) is identity in eval mode; a training variant
    # would draw a mask here via pltpu.prng_seed / pltpu.prng_random_bits.
    out_ref[...] = acc.astype(out_ref.dtype)


def data_embedding_wo_pos(x, x_mark, w_conv, *, freq: str = "h", tn: int = 1024,
                          out_dtype=jnp.bfloat16, in_dtype=jnp.bfloat16):
    """x: (B, L, c_in) float, x_mark: (B, L, >=F) int, w_conv: (d_model, c_in, 3)."""
    B, L, c_in = x.shape
    d_model = w_conv.shape[0]
    assert w_conv.shape == (d_model, c_in, 3)
    assert d_model % 2 == 0
    n_fields = 5 if freq == "t" else 4
    assert x_mark.shape[0] == B and x_mark.shape[1] == L and x_mark.shape[2] >= n_fields

    N = B * L
    Kc = 3 * c_in
    n_rows = 32   # covers month(13)/day(32)/weekday(7)/hour(24)/minute-bucket(4)
    # TODO(synk): for freq='t' the minute field must already be bucketed to 0..3
    # (as in the original TemporalEmbedding); raw minutes 0..59 would be zeroed.

    # --- circular-conv taps prepared in the wrapper (layout plumbing only) ----
    # Cast once to in_dtype (bf16 by default): halves these materialization
    # passes and feeds the MXU its native dtype; accumulation stays f32.
    x = x.astype(in_dtype)
    x_prev = jnp.roll(x, 1, axis=1)    # x[(t-1) mod L]
    x_next = jnp.roll(x, -1, axis=1)   # x[(t+1) mod L]
    x_cat = jnp.concatenate([x_prev, x, x_next], axis=-1).reshape(N, Kc)
    w_cat = jnp.concatenate([w_conv[:, :, 0].T, w_conv[:, :, 1].T,
                             w_conv[:, :, 2].T], axis=0).astype(in_dtype)    # (Kc, d_model)

    mark = x_mark[..., :n_fields].reshape(N, n_fields).astype(jnp.int32)
    table = make_fixed_embedding_table(n_rows, d_model).astype(in_dtype)

    in_item = jnp.dtype(in_dtype).itemsize
    out_item = jnp.dtype(out_dtype).itemsize

    # --- tile sizing: no wrapper padding, partial last block masked by Pallas --
    def footprint(t):
        # double-buffered streamed blocks + resident weights + f32 temps
        stream = t * Kc * in_item + t * n_fields * 4 + t * d_model * out_item
        resident = (Kc + n_rows) * d_model * in_item
        temps = 2 * t * d_model * 4
        return 2 * stream + resident + temps

    if N <= 8:
        tn_eff = N                                  # single full block
    else:
        tn_eff = min(_round_up(tn, 8), _round_up(N, 8))
        if pl.cdiv(N, tn_eff) < 2:                  # keep both v7x TCs busy
            tn_eff = _round_up(pl.cdiv(N, 2), 8)
        vmem_budget = 20 * 1024 * 1024              # headroom under 32 MiB scoped limit
        while footprint(tn_eff) > vmem_budget and tn_eff > 8:
            tn_eff = max(8, _round_up(tn_eff // 2, 8))

    grid_n = pl.cdiv(N, tn_eff)
    n_total = grid_n * tn_eff

    cost = pl.CostEstimate(
        flops=2 * n_total * (Kc + n_rows) * d_model,
        transcendentals=0,
        bytes_accessed=(N * Kc * in_item + N * n_fields * 4
                        + (Kc + n_rows) * d_model * in_item
                        + N * d_model * out_item),
    )

    out_flat = pl.pallas_call(
        _data_embedding_kernel,
        out_shape=jax.ShapeDtypeStruct((N, d_model), out_dtype),
        grid_spec=pltpu.PrefetchScalarGridSpec(
            num_scalar_prefetch=0,
            grid=(grid_n,),
            in_specs=[
                # last dims use the full array extents -> no wrapper padding;
                # for real configs d_model % 128 == 0 so output stores are
                # lane-dense; partial last token block is masked by Pallas.
                pl.BlockSpec((tn_eff, Kc), lambda i: (i, 0)),        # conv taps
                pl.BlockSpec((tn_eff, n_fields), lambda i: (i, 0)),  # time indices
                # constant index_maps: weight + table stay VMEM-resident (tiny)
                pl.BlockSpec((Kc, d_model), lambda i: (0, 0)),
                pl.BlockSpec((n_rows, d_model), lambda i: (0, 0)),
            ],
            out_specs=pl.BlockSpec((tn_eff, d_model), lambda i: (i, 0)),
        ),
        compiler_params=pltpu.CompilerParams(
            dimension_semantics=("parallel",),        # shard blocks across v7x's 2 TCs
            vmem_limit_bytes=32 * 1024 * 1024,        # raise v5e's 16 MiB scoped default
        ),
        cost_estimate=cost,
    )(x_cat, mark, w_cat, table)

    return out_flat.reshape(B, L, d_model)


if __name__ == "__main__":
    # Small shapes consistent with DataEmbedding_wo_pos: B=2, seq L=8, c_in=7,
    # d_model=32, freq='h' -> 4 temporal fields (month, day, weekday, hour).
    B, L, c_in, d_model = 2, 8, 7, 32
    key = jax.random.PRNGKey(0)
    kx, kw, km1, km2, km3, km4 = jax.random.split(key, 6)

    x = jax.random.normal(kx, (B, L, c_in), dtype=jnp.float32)

    # kaiming_normal_(mode='fan_in', nonlinearity='leaky_relu') as in TokenEmbedding
    fan_in = c_in * 3
    gain = math.sqrt(2.0 / (1.0 + 0.01 ** 2))
    w_conv = (gain / math.sqrt(fan_in)) * jax.random.normal(
        kw, (d_model, c_in, 3), dtype=jnp.float32)

    month = jax.random.randint(km1, (B, L), 0, 13)
    day = jax.random.randint(km2, (B, L), 1, 32)
    weekday = jax.random.randint(km3, (B, L), 0, 7)
    hour = jax.random.randint(km4, (B, L), 0, 24)
    x_mark = jnp.stack([month, day, weekday, hour], axis=-1).astype(jnp.int32)

    # ---- pure-JAX reference (eval-mode forward of DataEmbedding_wo_pos) -----
    xp = jnp.concatenate([x[:, -1:], x, x[:, :1]], axis=1)              # circular pad 1
    windows = jnp.stack([xp[:, k:k + L, :] for k in range(3)], axis=2)  # (B,L,3,c_in)
    ref_val = jnp.einsum("blkc,ock->blo", windows, w_conv,
                         precision=jax.lax.Precision.HIGHEST)
    tbl = {name: make_fixed_embedding_table(sz, d_model)
           for name, sz in (("month", 13), ("day", 32), ("weekday", 7), ("hour", 24))}
    ref_tmp = (jnp.take(tbl["hour"], hour, axis=0)
               + jnp.take(tbl["weekday"], weekday, axis=0)
               + jnp.take(tbl["day"], day, axis=0)
               + jnp.take(tbl["month"], month, axis=0))
    ref = ref_val + ref_tmp

    # Default fast path: bf16 inputs/outputs, f32 accumulation.
    out_bf16 = data_embedding_wo_pos(x, x_mark, w_conv, freq="h")
    out_bf16 = jax.block_until_ready(out_bf16)
    assert out_bf16.shape == (B, L, d_model)
    assert out_bf16.dtype == jnp.bfloat16
    assert jnp.allclose(out_bf16.astype(jnp.float32), ref, atol=1e-1, rtol=2e-2), \
        "bf16 path mismatch vs reference"

    # f32 parity path (matches PyTorch module numerics).
    out_f32 = data_embedding_wo_pos(x, x_mark, w_conv, freq="h",
                                    out_dtype=jnp.float32, in_dtype=jnp.float32)
    out_f32 = jax.block_until_ready(out_f32)
    assert out_f32.shape == (B, L, d_model)
    assert out_f32.dtype == jnp.float32
    assert jnp.allclose(out_f32, ref, atol=2e-3, rtol=2e-3), "f32 path mismatch vs reference"

    print("KERNEL_OK")
</pallas_src>

<mosaic_0001>
module attributes {stable_mosaic.version = 11 : i64} {
  func.func @_data_embedding_kernel(%arg0: i32, %arg1: memref<8x21xbf16, #tpu.memory_space<vmem>>, %arg2: memref<8x4xi32, #tpu.memory_space<vmem>>, %arg3: memref<21x32xbf16, #tpu.memory_space<vmem>>, %arg4: memref<32x32xbf16, #tpu.memory_space<vmem>>, %arg5: memref<8x32xbf16, #tpu.memory_space<vmem>>) attributes {dimension_semantics = [#tpu.dimension_semantics<parallel>], iteration_bounds = array<i64: 2>, scalar_prefetch = 0 : i64, scratch_operands = 0 : i64, tpu.core_type = #tpu.core_type<tc>, window_params = [{transform_indices = @transform_0, window_bounds = array<i64: 8, 21>}, {transform_indices = @transform_1, window_bounds = array<i64: 8, 4>}, {pipeline_mode = #tpu.pipeline_mode<synchronous>, transform_indices = @transform_2, window_bounds = array<i64: 21, 32>}, {pipeline_mode = #tpu.pipeline_mode<synchronous>, transform_indices = @transform_3, window_bounds = array<i64: 32, 32>}, {transform_indices = @transform_4, window_bounds = array<i64: 8, 32>}]} {
    %c0 = arith.constant 0 : index
    %c0_0 = arith.constant 0 : index
    %0 = vector.load %arg1[%c0, %c0_0] : memref<8x21xbf16, #tpu.memory_space<vmem>>, vector<8x21xbf16>
    %c0_1 = arith.constant 0 : index
    %c0_2 = arith.constant 0 : index
    %1 = vector.load %arg3[%c0_1, %c0_2] : memref<21x32xbf16, #tpu.memory_space<vmem>>, vector<21x32xbf16>
    %cst = arith.constant dense<0.000000e+00> : vector<8x32xf32>
    %2 = tpu.matmul %0, %1, %cst {dimension_numbers = #tpu.dot_dimension_numbers<[1], [0], [0], [1], [0, 0, 1, 1], [], []>} : vector<8x21xbf16>, vector<21x32xbf16>, vector<8x32xf32> -> vector<8x32xf32>
    %3 = tpu.iota {dimensions = array<i32: 1>} : vector<8x32xi32>
    %c0_3 = arith.constant 0 : index
    %c0_4 = arith.constant 0 : index
    %4 = vector.load %arg2[%c0_3, %c0_4] : memref<8x4xi32, #tpu.memory_space<vmem>>, vector<8x4xi32>
    %5 = vector.extract_strided_slice %4 {offsets = [0, 0], sizes = [8, 1], strides = [1, 1]} : vector<8x4xi32> to vector<8x1xi32>
    %6 = vector.broadcast %5 : vector<8x1xi32> to vector<8x32xi32>
    %7 = arith.cmpi eq, %6, %3 : vector<8x32xi32>
    %8 = arith.extui %7 : vector<8x32xi1> to vector<8x32xi32>
    %9 = arith.sitofp %8 : vector<8x32xi32> to vector<8x32xf32>
    %10 = arith.truncf %9 : vector<8x32xf32> to vector<8x32xbf16>
    %11 = vector.extract_strided_slice %4 {offsets = [0, 1], sizes = [8, 1], strides = [1, 1]} : vector<8x4xi32> to vector<8x1xi32>
    %12 = vector.broadcast %11 : vector<8x1xi32> to vector<8x32xi32>
    %13 = arith.cmpi eq, %12, %3 : vector<8x32xi32>
    %14 = arith.extui %13 : vector<8x32xi1> to vector<8x32xi32>
    %15 = arith.sitofp %14 : vector<8x32xi32> to vector<8x32xf32>
    %16 = arith.truncf %15 : vector<8x32xf32> to vector<8x32xbf16>
    %17 = arith.addf %10, %16 : vector<8x32xbf16>
    %18 = vector.extract_strided_slice %4 {offsets = [0, 2], sizes = [8, 1], strides = [1, 1]} : vector<8x4xi32> to vector<8x1xi32>
    %19 = vector.broadcast %18 : vector<8x1xi32> to vector<8x32xi32>
    %20 = arith.cmpi eq, %19, %3 : vector<8x32xi32>
    %21 = arith.extui %20 : vector<8x32xi1> to vector<8x32xi32>
    %22 = arith.sitofp %21 : vector<8x32xi32> to vector<8x32xf32>
    %23 = arith.truncf %22 : vector<8x32xf32> to vector<8x32xbf16>
    %24 = arith.addf %17, %23 : vector<8x32xbf16>
    %25 = vector.extract_strided_slice %4 {offsets = [0, 3], sizes = [8, 1], strides = [1, 1]} : vector<8x4xi32> to vector<8x1xi32>
    %26 = vector.broadcast %25 : vector<8x1xi32> to vector<8x32xi32>
    %27 = arith.cmpi eq, %26, %3 : vector<8x32xi32>
    %28 = arith.extui %27 : vector<8x32xi1> to vector<8x32xi32>
    %29 = arith.sitofp %28 : vector<8x32xi32> to vector<8x32xf32>
    %30 = arith.truncf %29 : vector<8x32xf32> to vector<8x32xbf16>
    %31 = arith.addf %24, %30 : vector<8x32xbf16>
    %c0_5 = arith.constant 0 : index
    %c0_6 = arith.constant 0 : index
    %32 = vector.load %arg4[%c0_5, %c0_6] : memref<32x32xbf16, #tpu.memory_space<vmem>>, vector<32x32xbf16>
    %cst_7 = arith.constant dense<0.000000e+00> : vector<8x32xf32>
    %33 = tpu.matmul %31, %32, %cst_7 {dimension_numbers = #tpu.dot_dimension_numbers<[1], [0], [0], [1], [0, 0, 1, 1], [], []>} : vector<8x32xbf16>, vector<32x32xbf16>, vector<8x32xf32> -> vector<8x32xf32>
    %34 = arith.addf %2, %33 : vector<8x32xf32>
    %35 = arith.truncf %34 : vector<8x32xf32> to vector<8x32xbf16>
    %c0_8 = arith.constant 0 : index
    %c0_9 = arith.constant 0 : index
    %36 = vector.load %arg5[%c0_8, %c0_9] : memref<8x32xbf16, #tpu.memory_space<vmem>>, vector<8x32xbf16>
    tpu.vector_store %arg5[%c0_8, %c0_9], %35 {strides = array<i32>} : memref<8x32xbf16, #tpu.memory_space<vmem>>, vector<8x32xbf16>,
    return
  }
  func.func @transform_0(%arg0: i32) -> (i32, i32) {
    %c0_i32 = arith.constant 0 : i32
    %c0_i32_0 = arith.constant 0 : i32
    return %arg0, %c0_i32 : i32, i32
  }
  func.func @transform_1(%arg0: i32) -> (i32, i32) {
    %c0_i32 = arith.constant 0 : i32
    %c0_i32_0 = arith.constant 0 : i32
    return %arg0, %c0_i32 : i32, i32
  }
  func.func @transform_2(%arg0: i32) -> (i32, i32) {
    %c0_i32 = arith.constant 0 : i32
    %c0_i32_0 = arith.constant 0 : i32
    %c0_i32_1 = arith.constant 0 : i32
    return %c0_i32, %c0_i32_0 : i32, i32
  }
  func.func @transform_3(%arg0: i32) -> (i32, i32) {
    %c0_i32 = arith.constant 0 : i32
    %c0_i32_0 = arith.constant 0 : i32
    %c0_i32_1 = arith.constant 0 : i32
    return %c0_i32, %c0_i32_0 : i32, i32
  }
  func.func @transform_4(%arg0: i32) -> (i32, i32) {
    %c0_i32 = arith.constant 0 : i32
    %c0_i32_0 = arith.constant 0 : i32
    return %arg0, %c0_i32 : i32, i32
  }
}

</mosaic_0001>

<llo_original>
// kernel: tpu_custom_call.1
$region0: #{tpu_custom_call.1}
  #allocation0 [shape = 'u32[]', space=smem, size = 0x4, offset = 0x4, fixed_abs, tag = 'smem constant byte address 0x4 - core index']
  #allocation1 [shape = 'u32[72,128]{1,0:T(1,128)}', space=vmem, size = 0x9000, scoped, tag = 'internal scratch']
  %s0 = inlined_call_operand.hbm [shape: bf16[16,21], index: 0, kind: input, shape index: {}]
  %s1 = inlined_call_operand.vmem [shape: s32[16,4], index: 1, kind: input, shape index: {}]
  %s2 = inlined_call_operand.hbm [shape: bf16[21,32], index: 2, kind: input, shape index: {}]
  %s3 = inlined_call_operand.vmem [shape: bf16[32,32], index: 3, kind: input, shape index: {}]
  %s4 = inlined_call_operand.hbm [shape: bf16[16,32], index: 4, kind: output, shape index: {}]
  %s5 = sld [smem:[#allocation0]]
  $region57: #{tpu_custom_call.1} parent=0
    _
  %s7 = ssub.s32 1, %s5
  %s8 = scalar_select 0, %s7, %s5
  $region1: #{tpu_custom_call.1} parent=0
    #allocation2 [shape = 'u8[4096]{0}', space=vmem, size = 0x1000, scoped, tag = 'input window, operand 0']
    #allocation3 [shape = 's32[2]{0}', space=sflag, size = 0x8, scoped, tag = 'scoped memory for tpu_custom_call.1']
    #allocation4 [shape = 's32[2]{0}', space=sflag, size = 0x8, scoped, tag = 'scoped memory for tpu_custom_call.1']
    #allocation5 [shape = 'u8[6144]{0}', space=vmem, size = 0x1800, scoped, tag = 'input window, operand 2, single buffered']
    #allocation6 [shape = 's32[1]{0}', space=sflag, size = 0x4, scoped, tag = 'scoped memory for tpu_custom_call.1']
    #allocation7 [shape = 'u8[4096]{0}', space=vmem, size = 0x1000, scoped, tag = 'output window, operand 0']
    %9 = vsyncpa [#allocation3], 0
    %s10 = scalar_lea.sflag [#allocation3], 1
    %11 = vsyncpa %s10, 0
    %12 = vsyncpa [#allocation6], 0
    %13 = vsyncpa [#allocation4], 0
    %s14 = scalar_lea.sflag [#allocation4], 1
    %15 = vsyncpa %s14, 0
    loop: start=0, step=1, limit=4
    $region2: #{tpu_custom_call.1} parent=1 // loop_pre_header
      _
    $region3: #{tpu_custom_call.1} parent=1 // loop_header
      %s17 = sphi 0, %s21
      %p18 = scmp.ge.s32.totalorder %s17, 4
      %s27 = sphi 0, %s29
      %s30 = sphi 0, %s27
      %s31 = sphi 0, %s30
      %s47 = sphi 0, %s31
      %s53 = sphi 0, %s55
      %s56 = sphi 0, %s53
      %s57 = sphi 0, %s56
      %s73 = sphi 0, %s57
      %s77 = sphi 0, %s77
      %s79 = sphi 0, %s77
      %s80 = sphi 0, %s79
      %s94 = sphi 0, %s80
      %s98 = sphi 0, %s98
      %s100 = sphi 0, %s98
      %s101 = sphi 0, %s100
      %s115 = sphi 0, %s101
      %s121 = sphi 0, %s123
      %s124 = sphi 0, %s121
      %s125 = sphi 0, %s124
      %s141 = sphi 0, %s125
    $region4: #{tpu_custom_call.1} parent=1 // loop_header_branch
      %20 = sbr.rel (%p18) target = $region8
    $region5: #{tpu_custom_call.1} parent=1 // loop_body
      %s22 = ssub.s32 %s17, 1
      %s23 = ssub.s32 %s17, 2
      %s24 = sadd.s32 %s17, 1
      %s25 = ssub.s32 %s17, %s24
      %p26 = scmp.eq.s32.totalorder %s25, 0
      %s28 = sadd.s32 %s27, 1
      %s29 = scalar_select %p26, %s27, %s28
      %p32 = pneg %p26
      %p33 = scmp.eq.s32.totalorder %s17, 1
      %p34 = por %p32, %p33
      %p35 = scmp.ne.s32.totalorder %s27, %s30
      %p36 = scmp.eq.s32.totalorder %s17, 0
      %p37 = por %p35, %p36
      %p38 = scmp.ne.s32.totalorder %s27, %s30
      %p39 = scmp.eq.s32.totalorder %s22, 1
      %p40 = por %p38, %p39
      %p41 = scmp.ne.s32.totalorder %s30, %s31
      %p42 = scmp.eq.s32.totalorder %s22, 0
      %p43 = por %p41, %p42
      %p44 = scmp.ne.s32.totalorder %s30, %s31
      %p45 = scmp.eq.s32.totalorder %s23, 1
      %p46 = por %p44, %p45
      %p48 = scmp.ne.s32.totalorder %s31, %s47
      %p49 = scmp.eq.s32.totalorder %s23, 0
      %p50 = por %p48, %p49
      %s51 = ssub.s32 %s17, %s24
      %p52 = scmp.eq.s32.totalorder %s51, 0
      %s54 = sadd.s32 %s53, 1
      %s55 = scalar_select %p52, %s53, %s54
      %p58 = pneg %p52
      %p59 = scmp.eq.s32.totalorder %s17, 1
      %p60 = por %p58, %p59
      %p61 = scmp.ne.s32.totalorder %s53, %s56
      %p62 = scmp.eq.s32.totalorder %s17, 0
      %p63 = por %p61, %p62
      %p64 = scmp.ne.s32.totalorder %s53, %s56
      %p65 = scmp.eq.s32.totalorder %s22, 1
      %p66 = por %p64, %p65
      %p67 = scmp.ne.s32.totalorder %s56, %s57
      %p68 = scmp.eq.s32.totalorder %s22, 0
      %p69 = por %p67, %p68
      %p70 = scmp.ne.s32.totalorder %s56, %s57
      %p71 = scmp.eq.s32.totalorder %s23, 1
      %p72 = por %p70, %p71
      %p74 = scmp.ne.s32.totalorder %s57, %s73
      %p75 = scmp.eq.s32.totalorder %s23, 0
      %p76 = por %p74, %p75
      %s78 = sadd.s32 %s77, 1
      %p81 = scmp.eq.s32.totalorder %s17, 1
      %p82 = scmp.ne.s32.totalorder %s77, %s79
      %p83 = scmp.eq.s32.totalorder %s17, 0
      %p84 = por %p82, %p83
      %p85 = scmp.ne.s32.totalorder %s77, %s79
      %p86 = scmp.eq.s32.totalorder %s22, 1
      %p87 = por %p85, %p86
      %p88 = scmp.ne.s32.totalorder %s79, %s80
      %p89 = scmp.eq.s32.totalorder %s22, 0
      %p90 = por %p88, %p89
      %p91 = scmp.ne.s32.totalorder %s79, %s80
      %p92 = scmp.eq.s32.totalorder %s23, 1
      %p93 = por %p91, %p92
      %p95 = scmp.ne.s32.totalorder %s80, %s94
      %p96 = scmp.eq.s32.totalorder %s23, 0
      %p97 = por %p95, %p96
      %s99 = sadd.s32 %s98, 1
      %p102 = scmp.eq.s32.totalorder %s17, 1
      %p103 = scmp.ne.s32.totalorder %s98, %s100
      %p104 = scmp.eq.s32.totalorder %s17, 0
      %p105 = por %p103, %p104
      %p106 = scmp.ne.s32.totalorder %s98, %s100
      %p107 = scmp.eq.s32.totalorder %s22, 1
      %p108 = por %p106, %p107
      %p109 = scmp.ne.s32.totalorder %s100, %s101
      %p110 = scmp.eq.s32.totalorder %s22, 0
      %p111 = por %p109, %p110
      %p112 = scmp.ne.s32.totalorder %s100, %s101
      %p113 = scmp.eq.s32.totalorder %s23, 1
      %p114 = por %p112, %p113
      %p116 = scmp.ne.s32.totalorder %s101, %s115
      %p117 = scmp.eq.s32.totalorder %s23, 0
      %p118 = por %p116, %p117
      %s119 = ssub.s32 %s17, %s24
      %p120 = scmp.eq.s32.totalorder %s119, 0
      %s122 = sadd.s32 %s121, 1
      %s123 = scalar_select %p120, %s121, %s122
      %p126 = pneg %p120
      %p127 = scmp.eq.s32.totalorder %s17, 1
      %p128 = por %p126, %p127
      %p129 = scmp.ne.s32.totalorder %s121, %s124
      %p130 = scmp.eq.s32.totalorder %s17, 0
      %p131 = por %p129, %p130
      %p132 = scmp.ne.s32.totalorder %s121, %s124
      %p133 = scmp.eq.s32.totalorder %s22, 1
      %p134 = por %p132, %p133
      %p135 = scmp.ne.s32.totalorder %s124, %s125
      %p136 = scmp.eq.s32.totalorder %s22, 0
      %p137 = por %p135, %p136
      %p138 = scmp.ne.s32.totalorder %s124, %s125
      %p139 = scmp.eq.s32.totalorder %s23, 1
      %p140 = por %p138, %p139
      %p142 = scmp.ne.s32.totalorder %s125, %s141
      %p143 = scmp.eq.s32.totalorder %s23, 0
      %p144 = por %p142, %p143
      %p145 = scmp.le.s32.totalorder 1, %s17
      %p146 = scmp.lt.s32.totalorder %s17, 3
      %p147 = pnand %p145, %p146
      %p148 = pneg %p147
      // Predicated region
      $region9: #{tpu_custom_call.1} parent=5 // pred_check
        _
      $region10: #{tpu_custom_call.1} parent=5 // pred_check_branch
        %150 = sbr.rel (%p147) target = $region12
      $region11: #{tpu_custom_call.1} parent=5 // pred_region
        %s151 = ssub.s32 %s17, 1
        // Predicated region
        $region13: #{tpu_custom_call.1} parent=11 // pred_check
          %p152 = pneg %p90
        $region14: #{tpu_custom_call.1} parent=11 // pred_check_branch
          %154 = sbr.rel (%p152) target = $region16
        $region15: #{tpu_custom_call.1} parent=11 // pred_region
          %156 = vsyncadd [#allocation6], 0
          %s157 = sshll.u32 %s2, 4
          %s158 = int_to_ptr.hbm [resolvable:$true] %s157
          %s159 = sshll.u32 [#allocation5], 4
          %s160 = int_to_ptr.vmem [resolvable:$true] %s159
          %165 = dma.hbm_to_vmem [thread:$0]  %s158, 192, %s160, [#allocation6], 64, 64, 4
        $region16: #{tpu_custom_call.1} parent=11 // pred_fallthru
          _
        // Predicated region
        $region17: #{tpu_custom_call.1} parent=11 // pred_check
          %p166 = pneg %p111
        $region18: #{tpu_custom_call.1} parent=11 // pred_check_branch
          %168 = sbr.rel (%p166) target = $region20
        $region19: #{tpu_custom_call.1} parent=11 // pred_region
          _
        $region20: #{tpu_custom_call.1} parent=11 // pred_fallthru
          _
      $region12: #{tpu_custom_call.1} parent=5 // pred_fallthru
        _
      %p169 = scmp.lt.s32.totalorder %s17, 2
      // Predicated region
      $region21: #{tpu_custom_call.1} parent=5 // pred_check
        %p170 = pneg %p169
      $region22: #{tpu_custom_call.1} parent=5 // pred_check_branch
        %172 = sbr.rel (%p170) target = $region24
      $region23: #{tpu_custom_call.1} parent=5 // pred_region
        // Predicated region
        $region25: #{tpu_custom_call.1} parent=23 // pred_check
          %p173 = pneg %p37
        $region26: #{tpu_custom_call.1} parent=23 // pred_check_branch
          %175 = sbr.rel (%p173) target = $region28
        $region27: #{tpu_custom_call.1} parent=23 // pred_region
          %s176 = sand.u32 %s27, 1
          %s177 = scalar_lea.sflag [#allocation3], %s176
          %s178 = sand.u32 %s27, 1
          %s179 = smul.addr %s178, 4
          %s180 = scalar_lea.vmem [#allocation2], %s179
          %182 = vsyncadd %s177, 0
          %s183 = smul.addr %s17, 4
          %s184 = scalar_lea.hbm %s0, %s183
          %s186 = sshll.u32 %s184, 4
          %s187 = int_to_ptr.hbm [resolvable:$true] %s186
          %s188 = sshll.u32 %s180, 4
          %s189 = int_to_ptr.vmem [resolvable:$true] %s188
          %191 = dma.hbm_to_vmem [thread:$0]  %s187, 64, %s189, %s177
        $region28: #{tpu_custom_call.1} parent=23 // pred_fallthru
          _
        // Predicated region
        $region29: #{tpu_custom_call.1} parent=23 // pred_check
          %p192 = pneg %p63
        $region30: #{tpu_custom_call.1} parent=23 // pred_check_branch
          %194 = sbr.rel (%p192) target = $region32
        $region31: #{tpu_custom_call.1} parent=23 // pred_region
          %p195 = scmp.lt.s32.totalorder %s17, 1
          %s196 = scalar_select %p195, %s17, 1
          %s197 = smul.addr %s196, 8
          %s198 = scalar_lea.vmem %s1, %s197
        $region32: #{tpu_custom_call.1} parent=23 // pred_fallthru
          _
      $region24: #{tpu_custom_call.1} parent=5 // pred_fallthru
        _
      %p199 = scmp.le.s32.totalorder 1, %s17
      %p200 = scmp.lt.s32.totalorder %s17, 3
      %p201 = pnand %p199, %p200
      %p202 = pneg %p201
      // Predicated region
      $region33: #{tpu_custom_call.1} parent=5 // pred_check
        _
      $region34: #{tpu_custom_call.1} parent=5 // pred_check_branch
        %204 = sbr.rel (%p201) target = $region36
      $region35: #{tpu_custom_call.1} parent=5 // pred_region
        %s205 = ssub.s32 %s17, 1
        %s206 = sand.u32 %s30, 1
        %s207 = scalar_lea.sflag [#allocation3], %s206
        %s208 = sand.u32 %s30, 1
        %s209 = smul.addr %s208, 4
        %s210 = scalar_lea.vmem [#allocation2], %s209
        // Predicated region
        $region37: #{tpu_custom_call.1} parent=35 // pred_check
          %p211 = pneg %p43
        $region38: #{tpu_custom_call.1} parent=35 // pred_check_branch
          %213 = sbr.rel (%p211) target = $region40
        $region39: #{tpu_custom_call.1} parent=35 // pred_region
          %215 = dma.done %s207, 64
        $region40: #{tpu_custom_call.1} parent=35 // pred_fallthru
          _
        // Predicated region
        $region41: #{tpu_custom_call.1} parent=35 // pred_check
          %p216 = pneg %p90
        $region42: #{tpu_custom_call.1} parent=35 // pred_check_branch
          %218 = sbr.rel (%p216) target = $region44
        $region43: #{tpu_custom_call.1} parent=35 // pred_region
          %220 = dma.done [#allocation6], 192
        $region44: #{tpu_custom_call.1} parent=35 // pred_fallthru
          _
        %s221 = sand.u32 %s30, 1
        %s222 = scalar_lea.sflag [#allocation3], %s221
        %s223 = sand.u32 %s30, 1
        %s224 = smul.addr %s223, 4
        %s225 = scalar_lea.vmem [#allocation2], %s224
        %p226 = pneg %p43
        %p227 = pneg %p40
        %p228 = scmp.lt.s32.totalorder %s22, 1
        %s229 = scalar_select %p228, %s22, 1
        %s230 = smul.addr %s229, 8
        %s231 = scalar_lea.vmem %s1, %s230
        %p232 = pneg %p69
        %p233 = pneg %p66
        %p234 = pneg %p90
        %p235 = pneg %p87
        %p236 = pneg %p111
        %p237 = pneg %p108
        %p238 = pneg %p137
        %p239 = pneg %p134
        %s240 = sand.u32 %s124, 1
        %s241 = scalar_lea.sflag [#allocation4], %s240
        %s242 = sand.u32 %s124, 1
        %s243 = smul.addr %s242, 4
        %s244 = scalar_lea.vmem [#allocation7], %s243
        %p245 = scmp.lt.s32.totalorder %s22, 1
        %s246 = scalar_select %p245, %s22, 1
        %s247 = smul.addr %s246, 8
        %s248 = scalar_lea.vmem %s1, %s247
        %v250 = vld [vmem:[%s210] sm:$0xf]
        %v251 = vld [vmem:[#allocation5] sm:$0xf]
        %v252 = vld [vmem:[#allocation5 + $0x4] sm:$0xf]
        %v253 = vld [vmem:[#allocation5 + $0x8] sm:$0x7]
        %v254 = vlaneseq
        %v255 = vand.u32 %v254, 127
        %v256 = vld [vmem:[%s248] sm:$0xff]
        %257 = vset.pattern.permute.xlu0 0
        %258 = vperm.xlu0 %257, %v256
        %v259 = vpop.permute.xlu0 %258
        %vm260 = vcmp.eq.s32.totalorder %v259, %v255
        %v261 = vsel %vm260, 1, 0
        %v262 = vcvt.s32.f32 %v261
        %v263 = vpack.c.bf16 %v262, %v262
        %264 = vset.pattern.permute.xlu0 1
        %265 = vperm.xlu0 %264, %v256
        %v266 = vpop.permute.xlu0 %265
        %vm267 = vcmp.eq.s32.totalorder %v266, %v255
        %v268 = vsel %vm267, 1, 0
        %v269 = vcvt.s32.f32 %v268
        %v270 = vpack.c.bf16 %v269, %v269
        %v271 = vunpack.c.l.bf16 %v263
        %v272 = vunpack.c.l.bf16 %v270
        %v273 = vadd.f32 %v271, %v272
        %v274 = vpack.c.bf16 %v273, %v273
        %275 = vset.pattern.permute.xlu0 2
        %276 = vperm.xlu0 %275, %v256
        %v277 = vpop.permute.xlu0 %276
        %vm278 = vcmp.eq.s32.totalorder %v277, %v255
        %v279 = vsel %vm278, 1, 0
        %v280 = vcvt.s32.f32 %v279
        %v281 = vpack.c.bf16 %v280, %v280
        %v282 = vunpack.c.l.bf16 %v274
        %v283 = vunpack.c.l.bf16 %v281
        %v284 = vadd.f32 %v282, %v283
        %v285 = vpack.c.bf16 %v284, %v284
        %286 = vset.pattern.permute.xlu0 3
        %287 = vperm.xlu0 %286, %v256
        %v288 = vpop.permute.xlu0 %287
        %vm289 = vcmp.eq.s32.totalorder %v288, %v255
        %v290 = vsel %vm289, 1, 0
        %v291 = vcvt.s32.f32 %v290
        %v292 = vpack.c.bf16 %v291, %v291
        %v293 = vunpack.c.l.bf16 %v285
        %v294 = vunpack.c.l.bf16 %v292
        %v295 = vadd.f32 %v293, %v294
        %v296 = vpack.c.bf16 %v295, %v295
        %v297 = vld [vmem:[%s3] sm:$0xf]
        %v298 = vld [vmem:[%s3 + $0x4] sm:$0xf]
        %v299 = vld [vmem:[%s3 + $0x8] sm:$0xf]
        %v300 = vld [vmem:[%s3 + $0xc] sm:$0xf]
        %v305 = vunpack.c.l.b16 %v297
        %v306 = vunpack.c.l.b16 %v298
        %v307 = vunpack.c.l.b16 %v299
        %v308 = vunpack.c.l.b16 %v300
        %v309 = vpack.c.b16 %v306, %v305
        %v310 = vpack.c.b16 %v308, %v307
        %vm313 = vcmask 261120
        %v315 = vsel %vm313, %v296, 0
        %317 = vmatpush.bf16.msra.mxu0 0
        %318 = vmatpush.bf16.msra.mxu0 0
        %319 = vmatpush.bf16.msra.mxu0 0
        %320 = vmatpush.bf16.msra.mxu0 0
        %321 = vmatpush.bf16.msra.mxu0 0
        %322 = vmatpush.bf16.msra.mxu0 0
        %323 = vmatpush.bf16.msra.mxu0 %v310
        %324 = vmatpush.bf16.msra.mxu0 %v309
        %325 = vmatmul.bf16.gmra.mxu0 %v315
        %v326 = vpop.f32.mrf.mxu0
        %v327 = vadd.f32 0.0, %v326
        %v328 = vpop.f32.mrf.mxu0
        %329 = vdwg.mxu0
        %v333 = vunpack.c.l.b16 %v251
        %v334 = vunpack.c.l.b16 %v252
        %v335 = vunpack.c.l.b16 %v253
        %v336 = vpack.c.b16 %v334, %v333
        %v337 = vpack.c.b16 %v335, %v335
        %vm339 = vcmask 171008
        %v341 = vsel %vm339, %v250, 0
        %vm343 = vcmask 1041408
        %vm344 = vcmask 1042432
        %v345 = vsel %vm343, 4294967295, 65535
        %v346 = vsel %vm344, %v345, 0
        %v348 = vand.u32 %v337, %v346
        %350 = vmatpush.bf16.msra.mxu0 0
        %351 = vmatpush.bf16.msra.mxu0 0
        %352 = vmatpush.bf16.msra.mxu0 0
        %353 = vmatpush.bf16.msra.mxu0 0
        %354 = vmatpush.bf16.msra.mxu0 0
        %355 = vmatpush.bf16.msra.mxu0 0
        %356 = vmatpush.bf16.msra.mxu0 %v348
        %357 = vmatpush.bf16.msra.mxu0 %v336
        %358 = vmatmul.bf16.gmra.mxu0 %v341
        %v359 = vpop.f32.mrf.mxu0
        %v360 = vadd.f32 %v327, %v359
        %v361 = vpop.f32.mrf.mxu0
        %362 = vdwg.mxu0
        %v363 = vpack.c.bf16 %v360, %v360
        %vm364 = vcmask 257024
        %365 = vst.msk [vmem:[%s244] sm:$0xf] %vm364, %v363
        %s366 = sand.u32 %s124, 1
        %s367 = scalar_lea.sflag [#allocation4], %s366
        %s368 = sand.u32 %s124, 1
        %s369 = smul.addr %s368, 4
        %s370 = scalar_lea.vmem [#allocation7], %s369
        // Predicated region
        $region45: #{tpu_custom_call.1} parent=35 // pred_check
          %p371 = pneg %p134
        $region46: #{tpu_custom_call.1} parent=35 // pred_check_branch
          %373 = sbr.rel (%p371) target = $region48
        $region47: #{tpu_custom_call.1} parent=35 // pred_region
          %375 = vsyncadd %s367, 0
          %s376 = smul.addr %s22, 4
          %s377 = scalar_lea.hbm %s4, %s376
          %s379 = sshll.u32 %s370, 4
          %s380 = int_to_ptr.vmem [resolvable:$true] %s379
          %s381 = sshll.u32 %s377, 4
          %s382 = int_to_ptr.hbm [resolvable:$true] %s381
          %384 = dma.vmem_to_hbm [thread:$0]  %s380, 64, %s382, %s367
        $region48: #{tpu_custom_call.1} parent=35 // pred_fallthru
          _
      $region36: #{tpu_custom_call.1} parent=5 // pred_fallthru
        _
      %p385 = scmp.le.s32.totalorder 2, %s17
      // Predicated region
      $region49: #{tpu_custom_call.1} parent=5 // pred_check
        %p386 = pneg %p385
      $region50: #{tpu_custom_call.1} parent=5 // pred_check_branch
        %388 = sbr.rel (%p386) target = $region52
      $region51: #{tpu_custom_call.1} parent=5 // pred_region
        %s389 = ssub.s32 %s17, 2
        // Predicated region
        $region53: #{tpu_custom_call.1} parent=51 // pred_check
          %p390 = pneg %p140
        $region54: #{tpu_custom_call.1} parent=51 // pred_check_branch
          %392 = sbr.rel (%p390) target = $region56
        $region55: #{tpu_custom_call.1} parent=51 // pred_region
          %s393 = sand.u32 %s125, 1
          %s394 = scalar_lea.sflag [#allocation4], %s393
          %s395 = sand.u32 %s125, 1
          %s396 = smul.addr %s395, 4
          %s397 = scalar_lea.vmem [#allocation7], %s396
          %399 = dma.done %s394, 64
        $region56: #{tpu_custom_call.1} parent=51 // pred_fallthru
          _
      $region52: #{tpu_custom_call.1} parent=5 // pred_fallthru
        _
    $region6: #{tpu_custom_call.1} parent=1 // loop_footer
      %s21 = sadd.s32 1, %s17
    $region7: #{tpu_custom_call.1} parent=1 // loop_footer_branch
      %16 = sbr.rel target = $region3
    $region8: #{tpu_custom_call.1} parent=1 // loop_exit
      _
    %400 = vsyncpa [#allocation3], 1
    %s401 = scalar_lea.sflag [#allocation3], 1
    %402 = vsyncpa %s401, 1
    %403 = vsyncpa [#allocation6], 1
    %404 = vsyncpa [#allocation4], 1
    %s405 = scalar_lea.sflag [#allocation4], 1
    %406 = vsyncpa %s405, 1

</llo_original>
